<compile_context>
chip_gen: v7x
topology: tpu7x:2x2x1
jax: 0.10.0
libtpu: 0.0.40
codegen_flags: <defaults>
</compile_context>

<pallas_src>
import jax
import jax.numpy as jnp
from jax.experimental import pallas as pl
from jax.experimental.pallas import tpu as pltpu


def classblock_kernel(x_ref, w1_ref, b1_ref, w2_ref, b2_ref, out_ref):
    # x streams in as f32; cast to the MXU compute dtype here (cheap VPU work,
    # hidden under the matmul) so the wrapper never makes a second pass over x.
    x = x_ref[...].astype(w1_ref.dtype)
    # Linear #1 with BatchNorm folded into w1/b1 (f32 accumulation on the MXU).
    h = jnp.dot(x, w1_ref[...], preferred_element_type=jnp.float32)
    h = h + b1_ref[...]                     # folded BN affine/bias, exact in f32
    # Dropout(p) in eval mode is the identity.
    h = h.astype(w2_ref.dtype)              # back to compute dtype for the MXU
    # Linear #2 (classifier).
    y = jnp.dot(h, w2_ref[...], preferred_element_type=jnp.float32)
    out_ref[...] = (y + b2_ref[...]).astype(out_ref.dtype)


def _round_up(n, m):
    return ((n + m - 1) // m) * m


def prepare_params(params, *, compute_dtype=jnp.bfloat16, eps=1e-5):
    """One-time weight preparation (hoisted out of the per-call forward).

    Folds eval-mode BatchNorm1d into the first Linear (exact, in f32), pads the
    feature axes to multiples of 128 (lane-dense MXU tiles / stores) and casts
    the matmul operands to `compute_dtype`.  Biases stay f32 for exact adds.
    Call once and reuse the result for every forward call.
    """
    inv_std = jax.lax.rsqrt(params["var"] + eps)                    # (1, nb)
    scale = params["gamma"] * inv_std                               # (1, nb)
    w1 = params["w1"] * scale                                       # (D, nb)
    b1 = (params["b1"] - params["mean"]) * scale + params["beta"]   # (1, nb)
    w2, b2 = params["w2"], params["b2"]

    nb = w1.shape[1]
    class_num = w2.shape[1]
    nbp = _round_up(nb, 128)
    cp = _round_up(class_num, 128)

    # Zero padding is exact: padded h columns carry zero bias and hit zero W2
    # rows, so they contribute nothing to the logits.
    w1 = jnp.pad(w1, ((0, 0), (0, nbp - nb)))
    b1 = jnp.pad(b1, ((0, 0), (0, nbp - nb)))
    w2 = jnp.pad(w2, ((0, nbp - nb), (0, cp - class_num)))
    b2 = jnp.pad(b2, ((0, 0), (0, cp - class_num)))

    return {
        "w1": w1.astype(compute_dtype),   # (D, nbp)   MXU operand
        "b1": b1,                         # (1, nbp)   f32
        "w2": w2.astype(compute_dtype),   # (nbp, Cp)  MXU operand
        "b2": b2,                         # (1, Cp)    f32
        "class_num": class_num,
    }


def _pick_batch_tile(batch, block_b):
    """Batch tile: multiple of 8 (prefer 128 for full MXU M occupancy),
    <= block_b, >= 2 grid steps when the batch allows it (v7x megacore), and
    dividing the batch exactly (pad-free x) unless that would shrink it >2x."""
    if batch <= 8:
        return 8
    cap = min(block_b, _round_up(batch, 8))
    # Leave at least two grid steps so both v7x TensorCores get work.
    cap = min(cap, max(8, _round_up(pl.cdiv(batch, 2), 8)))
    cap = (cap // 128) * 128 if cap >= 128 else (cap // 8) * 8
    for cand in range(cap, max(8, cap // 2) - 1, -8):
        if batch % cand == 0:
            return cand
    return cap


def _derive_vmem_limit(tb, d, nbp, cp, compute_dtype, out_dtype):
    cd = jnp.dtype(compute_dtype).itemsize
    od = jnp.dtype(out_dtype).itemsize
    x_tiles = tb * d * 4 * 2                     # f32 x tile, double-buffered
    out_tiles = tb * cp * od * 2                 # out tile, double-buffered
    weights = (d * nbp + nbp * cp) * cd          # single-buffered residents
    biases = (nbp + cp) * 4
    # compiler-managed temporaries: x cast, h (f32 + cast), f32 y accumulator
    scratch = tb * d * cd + tb * nbp * (4 + cd) + tb * cp * 4
    total = x_tiles + out_tiles + weights + biases + scratch
    return min(int(total * 1.5) + (2 << 20), 64 << 20)


def classblock_forward(x, prepared, *, block_b=512, out_dtype=jnp.float32):
    """Fused eval-mode ClassBlock forward.

    x: (B, input_dim) float32 pooled backbone features.
    prepared: result of `prepare_params` (folded / padded / cast weights).
    Returns (B, class_num) logits in `out_dtype`.
    """
    w1, b1, w2, b2 = prepared["w1"], prepared["b1"], prepared["w2"], prepared["b2"]
    class_num = prepared["class_num"]

    batch, d = x.shape
    assert w1.shape[0] == d, "input_dim mismatch between x and prepared params"
    nbp = w1.shape[1]
    cp = w2.shape[1]

    tb = _pick_batch_tile(batch, block_b)
    bp = pl.cdiv(batch, tb) * tb
    if bp != batch:                      # no-op whenever tb divides the batch
        x = jnp.pad(x, ((0, bp - batch), (0, 0)))

    cdtype = w1.dtype
    cd = jnp.dtype(cdtype).itemsize
    cost = pl.CostEstimate(
        flops=2 * bp * (d * nbp + nbp * cp),
        transcendentals=0,
        bytes_accessed=(bp * d * 4                    # x streamed once, f32
                        + (d * nbp + nbp * cp) * cd   # resident weights
                        + (nbp + cp) * 4              # f32 biases
                        + bp * cp * jnp.dtype(out_dtype).itemsize),
    )

    # Constant index_map -> fetched once; single buffer saves VMEM.
    resident = dict(pipeline_mode=pl.Buffered(buffer_count=1))

    out = pl.pallas_call(
        classblock_kernel,
        out_shape=jax.ShapeDtypeStruct((bp, cp), out_dtype),
        grid=(bp // tb,),
        in_specs=[
            pl.BlockSpec((tb, d), lambda i: (i, 0)),                 # x (streamed)
            pl.BlockSpec((d, nbp), lambda i: (0, 0), **resident),    # folded W1
            pl.BlockSpec((1, nbp), lambda i: (0, 0), **resident),    # folded b1
            pl.BlockSpec((nbp, cp), lambda i: (0, 0), **resident),   # W2
            pl.BlockSpec((1, cp), lambda i: (0, 0), **resident),     # b2
        ],
        out_specs=pl.BlockSpec((tb, cp), lambda i: (i, 0)),
        compiler_params=pltpu.CompilerParams(
            dimension_semantics=("parallel",),
            vmem_limit_bytes=_derive_vmem_limit(tb, d, nbp, cp, cdtype, out_dtype),
        ),
        cost_estimate=cost,
    )(x, w1, b1, w2, b2)

    return out[:batch, :class_num]


def make_params(key, input_dim, num_bottleneck, class_num):
    """Deterministic init matching the PyTorch module's init functions."""
    k1, k2 = jax.random.split(key, 2)

    # add_block Linear: kaiming_normal_(a=0, mode='fan_out') -> std = sqrt(2/out)
    std1 = (2.0 / num_bottleneck) ** 0.5
    w1_pt = jax.random.normal(k1, (num_bottleneck, input_dim), jnp.float32) * std1
    b1 = jnp.zeros((num_bottleneck,), jnp.float32)

    # BatchNorm1d: weight=1, bias=0, running stats mean=0 / var=1
    gamma = jnp.ones((num_bottleneck,), jnp.float32)
    beta = jnp.zeros((num_bottleneck,), jnp.float32)
    running_mean = jnp.zeros((num_bottleneck,), jnp.float32)
    running_var = jnp.ones((num_bottleneck,), jnp.float32)

    # classifier Linear: normal_(std=0.001), bias=0
    w2_pt = jax.random.normal(k2, (class_num, num_bottleneck), jnp.float32) * 0.001
    b2 = jnp.zeros((class_num,), jnp.float32)

    return {
        "w1": w1_pt.T,                         # (input_dim, num_bottleneck)
        "b1": b1.reshape(1, num_bottleneck),
        "gamma": gamma.reshape(1, num_bottleneck),
        "beta": beta.reshape(1, num_bottleneck),
        "mean": running_mean.reshape(1, num_bottleneck),
        "var": running_var.reshape(1, num_bottleneck),
        "w2": w2_pt.T,                         # (num_bottleneck, class_num)
        "b2": b2.reshape(1, class_num),
    }


if __name__ == "__main__":
    # Small shapes; real model uses input_dim=2048, num_bottleneck=512,
    # class_num=view_num (e.g. 751).
    B, input_dim, num_bottleneck, class_num = 16, 32, 64, 16

    key = jax.random.PRNGKey(0)
    kx, kp = jax.random.split(key)
    x = jax.random.normal(kx, (B, input_dim), jnp.float32)
    params = make_params(kp, input_dim, num_bottleneck, class_num)

    # plain-JAX f32 reference (eval-mode forward of ClassBlock)
    eps = 1e-5
    h = x @ params["w1"] + params["b1"]
    h = (h - params["mean"]) * jax.lax.rsqrt(params["var"] + eps) \
        * params["gamma"] + params["beta"]
    ref = h @ params["w2"] + params["b2"]

    # f32 compute path: tight check
    prep_f32 = prepare_params(params, compute_dtype=jnp.float32)
    out_f32 = classblock_forward(x, prep_f32)
    jax.block_until_ready(out_f32)
    assert out_f32.shape == (B, class_num)
    assert jnp.allclose(out_f32, ref, atol=1e-4, rtol=1e-4)

    # default bf16 compute path (f32 accumulation): loose check vs f32 reference
    prep_bf16 = prepare_params(params)          # one-time fold / pad / cast
    out_bf16 = classblock_forward(x, prep_bf16)
    jax.block_until_ready(out_bf16)
    assert out_bf16.shape == (B, class_num)
    assert jnp.allclose(out_bf16, ref, atol=2e-3, rtol=5e-2)

    print("KERNEL_OK")
</pallas_src>

<mosaic_0001>
module attributes {stable_mosaic.version = 11 : i64} {
  func.func @classblock_kernel(%arg0: i32, %arg1: memref<8x32xf32, #tpu.memory_space<vmem>>, %arg2: memref<32x128xf32, #tpu.memory_space<vmem>>, %arg3: memref<1x128xf32, #tpu.memory_space<vmem>>, %arg4: memref<128x128xf32, #tpu.memory_space<vmem>>, %arg5: memref<1x128xf32, #tpu.memory_space<vmem>>, %arg6: memref<8x128xf32, #tpu.memory_space<vmem>>) attributes {dimension_semantics = [#tpu.dimension_semantics<parallel>], iteration_bounds = array<i64: 2>, scalar_prefetch = 0 : i64, scratch_operands = 0 : i64, tpu.core_type = #tpu.core_type<tc>, window_params = [{transform_indices = @transform_0, window_bounds = array<i64: 8, 32>}, {pipeline_mode = #tpu.pipeline_mode<synchronous>, transform_indices = @transform_1, window_bounds = array<i64: 32, 128>}, {pipeline_mode = #tpu.pipeline_mode<synchronous>, transform_indices = @transform_2, window_bounds = array<i64: 1, 128>}, {pipeline_mode = #tpu.pipeline_mode<synchronous>, transform_indices = @transform_3, window_bounds = array<i64: 128, 128>}, {pipeline_mode = #tpu.pipeline_mode<synchronous>, transform_indices = @transform_4, window_bounds = array<i64: 1, 128>}, {transform_indices = @transform_5, window_bounds = array<i64: 8, 128>}]} {
    %c0 = arith.constant 0 : index
    %c0_0 = arith.constant 0 : index
    %0 = vector.load %arg1[%c0, %c0_0] : memref<8x32xf32, #tpu.memory_space<vmem>>, vector<8x32xf32>
    %c0_1 = arith.constant 0 : index
    %c0_2 = arith.constant 0 : index
    %1 = vector.load %arg2[%c0_1, %c0_2] : memref<32x128xf32, #tpu.memory_space<vmem>>, vector<32x128xf32>
    %cst = arith.constant dense<0.000000e+00> : vector<8x128xf32>
    %2 = tpu.matmul %0, %1, %cst {dimension_numbers = #tpu.dot_dimension_numbers<[1], [0], [0], [1], [0, 0, 1, 1], [], []>} : vector<8x32xf32>, vector<32x128xf32>, vector<8x128xf32> -> vector<8x128xf32>
    %c0_3 = arith.constant 0 : index
    %c0_4 = arith.constant 0 : index
    %3 = vector.load %arg3[%c0_3, %c0_4] : memref<1x128xf32, #tpu.memory_space<vmem>>, vector<1x128xf32>
    %4 = vector.broadcast %3 : vector<1x128xf32> to vector<8x128xf32>
    %5 = arith.addf %2, %4 : vector<8x128xf32>
    %c0_5 = arith.constant 0 : index
    %c0_6 = arith.constant 0 : index
    %6 = vector.load %arg4[%c0_5, %c0_6] : memref<128x128xf32, #tpu.memory_space<vmem>>, vector<128x128xf32>
    %cst_7 = arith.constant dense<0.000000e+00> : vector<8x128xf32>
    %7 = tpu.matmul %5, %6, %cst_7 {dimension_numbers = #tpu.dot_dimension_numbers<[1], [0], [0], [1], [0, 0, 1, 1], [], []>} : vector<8x128xf32>, vector<128x128xf32>, vector<8x128xf32> -> vector<8x128xf32>
    %c0_8 = arith.constant 0 : index
    %c0_9 = arith.constant 0 : index
    %8 = vector.load %arg5[%c0_8, %c0_9] : memref<1x128xf32, #tpu.memory_space<vmem>>, vector<1x128xf32>
    %9 = vector.broadcast %8 : vector<1x128xf32> to vector<8x128xf32>
    %10 = arith.addf %7, %9 : vector<8x128xf32>
    %c0_10 = arith.constant 0 : index
    %c0_11 = arith.constant 0 : index
    %11 = vector.load %arg6[%c0_10, %c0_11] : memref<8x128xf32, #tpu.memory_space<vmem>>, vector<8x128xf32>
    tpu.vector_store %arg6[%c0_10, %c0_11], %10 {strides = array<i32>} : memref<8x128xf32, #tpu.memory_space<vmem>>, vector<8x128xf32>,
    return
  }
  func.func @transform_0(%arg0: i32) -> (i32, i32) {
    %c0_i32 = arith.constant 0 : i32
    %c0_i32_0 = arith.constant 0 : i32
    return %arg0, %c0_i32 : i32, i32
  }
  func.func @transform_1(%arg0: i32) -> (i32, i32) {
    %c0_i32 = arith.constant 0 : i32
    %c0_i32_0 = arith.constant 0 : i32
    %c0_i32_1 = arith.constant 0 : i32
    return %c0_i32, %c0_i32_0 : i32, i32
  }
  func.func @transform_2(%arg0: i32) -> (i32, i32) {
    %c0_i32 = arith.constant 0 : i32
    %c0_i32_0 = arith.constant 0 : i32
    %c0_i32_1 = arith.constant 0 : i32
    return %c0_i32, %c0_i32_0 : i32, i32
  }
  func.func @transform_3(%arg0: i32) -> (i32, i32) {
    %c0_i32 = arith.constant 0 : i32
    %c0_i32_0 = arith.constant 0 : i32
    %c0_i32_1 = arith.constant 0 : i32
    return %c0_i32, %c0_i32_0 : i32, i32
  }
  func.func @transform_4(%arg0: i32) -> (i32, i32) {
    %c0_i32 = arith.constant 0 : i32
    %c0_i32_0 = arith.constant 0 : i32
    %c0_i32_1 = arith.constant 0 : i32
    return %c0_i32, %c0_i32_0 : i32, i32
  }
  func.func @transform_5(%arg0: i32) -> (i32, i32) {
    %c0_i32 = arith.constant 0 : i32
    %c0_i32_0 = arith.constant 0 : i32
    return %arg0, %c0_i32 : i32, i32
  }
}

</mosaic_0001>

<llo_original>
// kernel: tpu_custom_call.1
$region0: #{tpu_custom_call.1}
  #allocation0 [shape = 'u32[]', space=smem, size = 0x4, offset = 0x4, fixed_abs, tag = 'smem constant byte address 0x4 - core index']
  #allocation1 [shape = 'u32[144,128]{1,0:T(1,128)}', space=vmem, size = 0x12000, scoped, tag = 'internal scratch']
  %s0 = inlined_call_operand.hbm [shape: f32[16,32], index: 0, kind: input, shape index: {}]
  %s1 = inlined_call_operand.hbm [shape: f32[32,128], index: 1, kind: input, shape index: {}]
  %s2 = inlined_call_operand.vmem [shape: f32[1,128], index: 2, kind: input, shape index: {}]
  %s3 = inlined_call_operand.hbm [shape: f32[128,128], index: 3, kind: input, shape index: {}]
  %s4 = inlined_call_operand.vmem [shape: f32[1,128], index: 4, kind: input, shape index: {}]
  %s5 = inlined_call_operand.hbm [shape: f32[16,128], index: 5, kind: output, shape index: {}]
  %s6 = sld [smem:[#allocation0]]
  $region65: #{tpu_custom_call.1} parent=0
    _
  %s8 = ssub.s32 1, %s6
  %s9 = scalar_select 0, %s8, %s6
  $region1: #{tpu_custom_call.1} parent=0
    #allocation2 [shape = 'u8[8192]{0}', space=vmem, size = 0x2000, scoped, tag = 'input window, operand 0']
    #allocation3 [shape = 's32[2]{0}', space=sflag, size = 0x8, scoped, tag = 'scoped memory for tpu_custom_call.1']
    #allocation4 [shape = 's32[2]{0}', space=sflag, size = 0x8, scoped, tag = 'scoped memory for tpu_custom_call.1']
    #allocation5 [shape = 'u8[16384]{0}', space=vmem, size = 0x4000, scoped, tag = 'input window, operand 1, single buffered']
    #allocation6 [shape = 's32[1]{0}', space=sflag, size = 0x4, scoped, tag = 'scoped memory for tpu_custom_call.1']
    #allocation7 [shape = 'u8[65536]{0}', space=vmem, size = 0x10000, scoped, tag = 'input window, operand 3, single buffered']
    #allocation8 [shape = 'u8[8192]{0}', space=vmem, size = 0x2000, scoped, tag = 'output window, operand 0']
    %10 = vsyncpa [#allocation3], 0
    %s11 = scalar_lea.sflag [#allocation3], 1
    %12 = vsyncpa %s11, 0
    %13 = vsyncpa [#allocation6], 0
    %14 = vsyncpa [#allocation4], 0
    %s15 = scalar_lea.sflag [#allocation4], 1
    %16 = vsyncpa %s15, 0
    loop: start=0, step=1, limit=4
    $region2: #{tpu_custom_call.1} parent=1 // loop_pre_header
      _
    $region3: #{tpu_custom_call.1} parent=1 // loop_header
      %s18 = sphi 0, %s22
      %p19 = scmp.ge.s32.totalorder %s18, 4
      %s28 = sphi 0, %s30
      %s31 = sphi 0, %s28
      %s32 = sphi 0, %s31
      %s48 = sphi 0, %s32
      %s52 = sphi 0, %s52
      %s54 = sphi 0, %s52
      %s55 = sphi 0, %s54
      %s69 = sphi 0, %s55
      %s73 = sphi 0, %s73
      %s75 = sphi 0, %s73
      %s76 = sphi 0, %s75
      %s90 = sphi 0, %s76
      %s94 = sphi 0, %s94
      %s96 = sphi 0, %s94
      %s97 = sphi 0, %s96
      %s111 = sphi 0, %s97
      %s115 = sphi 0, %s115
      %s117 = sphi 0, %s115
      %s118 = sphi 0, %s117
      %s132 = sphi 0, %s118
      %s138 = sphi 0, %s140
      %s141 = sphi 0, %s138
      %s142 = sphi 0, %s141
      %s158 = sphi 0, %s142
    $region4: #{tpu_custom_call.1} parent=1 // loop_header_branch
      %21 = sbr.rel (%p19) target = $region8
    $region5: #{tpu_custom_call.1} parent=1 // loop_body
      %s23 = ssub.s32 %s18, 1
      %s24 = ssub.s32 %s18, 2
      %s25 = sadd.s32 %s18, 1
      %s26 = ssub.s32 %s18, %s25
      %p27 = scmp.eq.s32.totalorder %s26, 0
      %s29 = sadd.s32 %s28, 1
      %s30 = scalar_select %p27, %s28, %s29
      %p33 = pneg %p27
      %p34 = scmp.eq.s32.totalorder %s18, 1
      %p35 = por %p33, %p34
      %p36 = scmp.ne.s32.totalorder %s28, %s31
      %p37 = scmp.eq.s32.totalorder %s18, 0
      %p38 = por %p36, %p37
      %p39 = scmp.ne.s32.totalorder %s28, %s31
      %p40 = scmp.eq.s32.totalorder %s23, 1
      %p41 = por %p39, %p40
      %p42 = scmp.ne.s32.totalorder %s31, %s32
      %p43 = scmp.eq.s32.totalorder %s23, 0
      %p44 = por %p42, %p43
      %p45 = scmp.ne.s32.totalorder %s31, %s32
      %p46 = scmp.eq.s32.totalorder %s24, 1
      %p47 = por %p45, %p46
      %p49 = scmp.ne.s32.totalorder %s32, %s48
      %p50 = scmp.eq.s32.totalorder %s24, 0
      %p51 = por %p49, %p50
      %s53 = sadd.s32 %s52, 1
      %p56 = scmp.eq.s32.totalorder %s18, 1
      %p57 = scmp.ne.s32.totalorder %s52, %s54
      %p58 = scmp.eq.s32.totalorder %s18, 0
      %p59 = por %p57, %p58
      %p60 = scmp.ne.s32.totalorder %s52, %s54
      %p61 = scmp.eq.s32.totalorder %s23, 1
      %p62 = por %p60, %p61
      %p63 = scmp.ne.s32.totalorder %s54, %s55
      %p64 = scmp.eq.s32.totalorder %s23, 0
      %p65 = por %p63, %p64
      %p66 = scmp.ne.s32.totalorder %s54, %s55
      %p67 = scmp.eq.s32.totalorder %s24, 1
      %p68 = por %p66, %p67
      %p70 = scmp.ne.s32.totalorder %s55, %s69
      %p71 = scmp.eq.s32.totalorder %s24, 0
      %p72 = por %p70, %p71
      %s74 = sadd.s32 %s73, 1
      %p77 = scmp.eq.s32.totalorder %s18, 1
      %p78 = scmp.ne.s32.totalorder %s73, %s75
      %p79 = scmp.eq.s32.totalorder %s18, 0
      %p80 = por %p78, %p79
      %p81 = scmp.ne.s32.totalorder %s73, %s75
      %p82 = scmp.eq.s32.totalorder %s23, 1
      %p83 = por %p81, %p82
      %p84 = scmp.ne.s32.totalorder %s75, %s76
      %p85 = scmp.eq.s32.totalorder %s23, 0
      %p86 = por %p84, %p85
      %p87 = scmp.ne.s32.totalorder %s75, %s76
      %p88 = scmp.eq.s32.totalorder %s24, 1
      %p89 = por %p87, %p88
      %p91 = scmp.ne.s32.totalorder %s76, %s90
      %p92 = scmp.eq.s32.totalorder %s24, 0
      %p93 = por %p91, %p92
      %s95 = sadd.s32 %s94, 1
      %p98 = scmp.eq.s32.totalorder %s18, 1
      %p99 = scmp.ne.s32.totalorder %s94, %s96
      %p100 = scmp.eq.s32.totalorder %s18, 0
      %p101 = por %p99, %p100
      %p102 = scmp.ne.s32.totalorder %s94, %s96
      %p103 = scmp.eq.s32.totalorder %s23, 1
      %p104 = por %p102, %p103
      %p105 = scmp.ne.s32.totalorder %s96, %s97
      %p106 = scmp.eq.s32.totalorder %s23, 0
      %p107 = por %p105, %p106
      %p108 = scmp.ne.s32.totalorder %s96, %s97
      %p109 = scmp.eq.s32.totalorder %s24, 1
      %p110 = por %p108, %p109
      %p112 = scmp.ne.s32.totalorder %s97, %s111
      %p113 = scmp.eq.s32.totalorder %s24, 0
      %p114 = por %p112, %p113
      %s116 = sadd.s32 %s115, 1
      %p119 = scmp.eq.s32.totalorder %s18, 1
      %p120 = scmp.ne.s32.totalorder %s115, %s117
      %p121 = scmp.eq.s32.totalorder %s18, 0
      %p122 = por %p120, %p121
      %p123 = scmp.ne.s32.totalorder %s115, %s117
      %p124 = scmp.eq.s32.totalorder %s23, 1
      %p125 = por %p123, %p124
      %p126 = scmp.ne.s32.totalorder %s117, %s118
      %p127 = scmp.eq.s32.totalorder %s23, 0
      %p128 = por %p126, %p127
      %p129 = scmp.ne.s32.totalorder %s117, %s118
      %p130 = scmp.eq.s32.totalorder %s24, 1
      %p131 = por %p129, %p130
      %p133 = scmp.ne.s32.totalorder %s118, %s132
      %p134 = scmp.eq.s32.totalorder %s24, 0
      %p135 = por %p133, %p134
      %s136 = ssub.s32 %s18, %s25
      %p137 = scmp.eq.s32.totalorder %s136, 0
      %s139 = sadd.s32 %s138, 1
      %s140 = scalar_select %p137, %s138, %s139
      %p143 = pneg %p137
      %p144 = scmp.eq.s32.totalorder %s18, 1
      %p145 = por %p143, %p144
      %p146 = scmp.ne.s32.totalorder %s138, %s141
      %p147 = scmp.eq.s32.totalorder %s18, 0
      %p148 = por %p146, %p147
      %p149 = scmp.ne.s32.totalorder %s138, %s141
      %p150 = scmp.eq.s32.totalorder %s23, 1
      %p151 = por %p149, %p150
      %p152 = scmp.ne.s32.totalorder %s141, %s142
      %p153 = scmp.eq.s32.totalorder %s23, 0
      %p154 = por %p152, %p153
      %p155 = scmp.ne.s32.totalorder %s141, %s142
      %p156 = scmp.eq.s32.totalorder %s24, 1
      %p157 = por %p155, %p156
      %p159 = scmp.ne.s32.totalorder %s142, %s158
      %p160 = scmp.eq.s32.totalorder %s24, 0
      %p161 = por %p159, %p160
      %p162 = scmp.le.s32.totalorder 1, %s18
      %p163 = scmp.lt.s32.totalorder %s18, 3
      %p164 = pnand %p162, %p163
      %p165 = pneg %p164
      // Predicated region
      $region9: #{tpu_custom_call.1} parent=5 // pred_check
        _
      $region10: #{tpu_custom_call.1} parent=5 // pred_check_branch
        %167 = sbr.rel (%p164) target = $region12
      $region11: #{tpu_custom_call.1} parent=5 // pred_region
        %s168 = ssub.s32 %s18, 1
        // Predicated region
        $region13: #{tpu_custom_call.1} parent=11 // pred_check
          %p169 = pneg %p65
        $region14: #{tpu_custom_call.1} parent=11 // pred_check_branch
          %171 = sbr.rel (%p169) target = $region16
        $region15: #{tpu_custom_call.1} parent=11 // pred_region
          %s173 = ssub.s32 512, 512
          %174 = vsyncadd [#allocation6], %s173
          %s175 = sshll.u32 [#allocation5], 4
          %s176 = int_to_ptr.vmem [resolvable:$true] %s175
          %181 = dma.hbm_to_vmem [thread:$0]  %s1, 512, %s176, [#allocation6], 128, 128, 8
        $region16: #{tpu_custom_call.1} parent=11 // pred_fallthru
          _
        // Predicated region
        $region17: #{tpu_custom_call.1} parent=11 // pred_check
          %p182 = pneg %p86
        $region18: #{tpu_custom_call.1} parent=11 // pred_check_branch
          %184 = sbr.rel (%p182) target = $region20
        $region19: #{tpu_custom_call.1} parent=11 // pred_region
          _
        $region20: #{tpu_custom_call.1} parent=11 // pred_fallthru
          _
        // Predicated region
        $region21: #{tpu_custom_call.1} parent=11 // pred_check
          %p185 = pneg %p107
        $region22: #{tpu_custom_call.1} parent=11 // pred_check_branch
          %187 = sbr.rel (%p185) target = $region24
        $region23: #{tpu_custom_call.1} parent=11 // pred_region
          %s189 = ssub.s32 2048, 2048
          %190 = vsyncadd [#allocation6], %s189
          %s191 = sshll.u32 [#allocation7], 4
          %s192 = int_to_ptr.vmem [resolvable:$true] %s191
          %197 = dma.hbm_to_vmem [thread:$0]  %s3, 2048, %s192, [#allocation6], 128, 128, 8
        $region24: #{tpu_custom_call.1} parent=11 // pred_fallthru
          _
        // Predicated region
        $region25: #{tpu_custom_call.1} parent=11 // pred_check
          %p198 = pneg %p128
        $region26: #{tpu_custom_call.1} parent=11 // pred_check_branch
          %200 = sbr.rel (%p198) target = $region28
        $region27: #{tpu_custom_call.1} parent=11 // pred_region
          _
        $region28: #{tpu_custom_call.1} parent=11 // pred_fallthru
          _
      $region12: #{tpu_custom_call.1} parent=5 // pred_fallthru
        _
      %p201 = scmp.lt.s32.totalorder %s18, 2
      // Predicated region
      $region29: #{tpu_custom_call.1} parent=5 // pred_check
        %p202 = pneg %p201
      $region30: #{tpu_custom_call.1} parent=5 // pred_check_branch
        %204 = sbr.rel (%p202) target = $region32
      $region31: #{tpu_custom_call.1} parent=5 // pred_region
        // Predicated region
        $region33: #{tpu_custom_call.1} parent=31 // pred_check
          %p205 = pneg %p38
        $region34: #{tpu_custom_call.1} parent=31 // pred_check_branch
          %207 = sbr.rel (%p205) target = $region36
        $region35: #{tpu_custom_call.1} parent=31 // pred_region
          %s208 = sand.u32 %s28, 1
          %s209 = scalar_lea.sflag [#allocation3], %s208
          %s210 = sand.u32 %s28, 1
          %s211 = smul.addr %s210, 8
          %s212 = scalar_lea.vmem [#allocation2], %s211
          %s214 = ssub.s32 128, 128
          %215 = vsyncadd %s209, %s214
          %s216 = smul.addr %s18, 128
          %s217 = scalar_lea.hbm %s0, %s216
          %s219 = sshll.u32 %s212, 4
          %s220 = int_to_ptr.vmem [resolvable:$true] %s219
          %222 = dma.hbm_to_vmem [thread:$0]  %s217, 128, %s220, %s209
        $region36: #{tpu_custom_call.1} parent=31 // pred_fallthru
          _
      $region32: #{tpu_custom_call.1} parent=5 // pred_fallthru
        _
      %p223 = scmp.le.s32.totalorder 1, %s18
      %p224 = scmp.lt.s32.totalorder %s18, 3
      %p225 = pnand %p223, %p224
      %p226 = pneg %p225
      // Predicated region
      $region37: #{tpu_custom_call.1} parent=5 // pred_check
        _
      $region38: #{tpu_custom_call.1} parent=5 // pred_check_branch
        %228 = sbr.rel (%p225) target = $region40
      $region39: #{tpu_custom_call.1} parent=5 // pred_region
        %s229 = ssub.s32 %s18, 1
        %s230 = sand.u32 %s31, 1
        %s231 = scalar_lea.sflag [#allocation3], %s230
        %s232 = sand.u32 %s31, 1
        %s233 = smul.addr %s232, 8
        %s234 = scalar_lea.vmem [#allocation2], %s233
        // Predicated region
        $region41: #{tpu_custom_call.1} parent=39 // pred_check
          %p235 = pneg %p44
        $region42: #{tpu_custom_call.1} parent=39 // pred_check_branch
          %237 = sbr.rel (%p235) target = $region44
        $region43: #{tpu_custom_call.1} parent=39 // pred_region
          %238 = dma.done %s231, 128
        $region44: #{tpu_custom_call.1} parent=39 // pred_fallthru
          _
        // Predicated region
        $region45: #{tpu_custom_call.1} parent=39 // pred_check
          %p239 = pneg %p65
        $region46: #{tpu_custom_call.1} parent=39 // pred_check_branch
          %241 = sbr.rel (%p239) target = $region48
        $region47: #{tpu_custom_call.1} parent=39 // pred_region
          %242 = dma.done [#allocation6], 512
        $region48: #{tpu_custom_call.1} parent=39 // pred_fallthru
          _
        // Predicated region
        $region49: #{tpu_custom_call.1} parent=39 // pred_check
          %p243 = pneg %p107
        $region50: #{tpu_custom_call.1} parent=39 // pred_check_branch
          %245 = sbr.rel (%p243) target = $region52
        $region51: #{tpu_custom_call.1} parent=39 // pred_region
          %246 = dma.done [#allocation6], 2048
        $region52: #{tpu_custom_call.1} parent=39 // pred_fallthru
          _
        %s247 = sand.u32 %s31, 1
        %s248 = scalar_lea.sflag [#allocation3], %s247
        %s249 = sand.u32 %s31, 1
        %s250 = smul.addr %s249, 8
        %s251 = scalar_lea.vmem [#allocation2], %s250
        %p252 = pneg %p44
        %p253 = pneg %p41
        %p254 = pneg %p65
        %p255 = pneg %p62
        %p256 = pneg %p86
        %p257 = pneg %p83
        %p258 = pneg %p107
        %p259 = pneg %p104
        %p260 = pneg %p128
        %p261 = pneg %p125
        %p262 = pneg %p154
        %p263 = pneg %p151
        %s264 = sand.u32 %s141, 1
        %s265 = scalar_lea.sflag [#allocation4], %s264
        %s266 = sand.u32 %s141, 1
        %s267 = smul.addr %s266, 8
        %s268 = scalar_lea.vmem [#allocation8], %s267
        %v269 = vld [vmem:[%s234] sm:$0xff]
        %v270 = vld [vmem:[#allocation5] sm:$0xff]
        %v271 = vld [vmem:[#allocation5 + $0x8] sm:$0xff]
        %v272 = vld [vmem:[#allocation5 + $0x10] sm:$0xff]
        %v273 = vld [vmem:[#allocation5 + $0x18] sm:$0xff]
        %v274 = vld [vmem:[%s2] sm:$0x1]
        %v276 = vlaneseq
        %v277 = vshrl.u32 %v276, 7
        %v278 = vsub.s32 0, %v277
        %v279 = vrot.slane %v274, %v278
        %vm281 = vcmask 261120
        %v283 = vsel %vm281, %v269, 0
        %285 = vmatprep.subr.mxu0 0.0
        %286 = vmatpush1.msra.mxu0 %v270
        %287 = vmatprep.subr.mxu0 0.0
        %288 = vmatpush1.msra.mxu0 %v271
        %289 = vmatprep.subr.mxu0 0.0
        %290 = vmatpush1.msra.mxu0 %v272
        %291 = vmatprep.subr.mxu0 0.0
        %292 = vmatpush1.msra.mxu0 %v273
        %293 = vmatprep.subr.mxu0 0.0
        %294 = vmatpush1.msra.mxu0 0.0
        %295 = vmatprep.subr.mxu0 0.0
        %296 = vmatpush1.msra.mxu0 0.0
        %297 = vmatprep.subr.mxu0 0.0
        %298 = vmatpush1.msra.mxu0 0.0
        %299 = vmatprep.subr.mxu0 0.0
        %300 = vmatpush1.msra.mxu0 0.0
        %301 = vmatprep.subr.mxu0 0.0
        %302 = vmatpush1.msra.mxu0 0.0
        %303 = vmatprep.subr.mxu0 0.0
        %304 = vmatpush1.msra.mxu0 0.0
        %305 = vmatprep.subr.mxu0 0.0
        %306 = vmatpush1.msra.mxu0 0.0
        %307 = vmatprep.subr.mxu0 0.0
        %308 = vmatpush1.msra.mxu0 0.0
        %309 = vmatprep.subr.mxu0 0.0
        %310 = vmatpush1.msra.mxu0 0.0
        %311 = vmatprep.subr.mxu0 0.0
        %312 = vmatpush1.msra.mxu0 0.0
        %313 = vmatprep.subr.mxu0 0.0
        %314 = vmatpush1.msra.mxu0 0.0
        %315 = vmatprep.subr.mxu0 0.0
        %316 = vmatpush1.msra.mxu0 0.0
        %317 = vmatprep.subr.mxu0 0.0
        %318 = vmatpush1.msra.mxu0 0.0
        %319 = vmatprep.subr.mxu0 0.0
        %320 = vmatpush1.msra.mxu0 0.0
        %321 = vmatprep.subr.mxu0 0.0
        %322 = vmatpush1.msra.mxu0 0.0
        %323 = vmatprep.subr.mxu0 0.0
        %324 = vmatpush1.msra.mxu0 0.0
        %325 = vmatprep.subr.mxu0 0.0
        %326 = vmatpush1.msra.mxu0 0.0
        %327 = vmatprep.subr.mxu0 0.0
        %328 = vmatpush1.msra.mxu0 0.0
        %329 = vmatprep.subr.mxu0 0.0
        %330 = vmatpush1.msra.mxu0 0.0
        %331 = vmatprep.subr.mxu0 0.0
        %332 = vmatpush1.msra.mxu0 0.0
        %333 = vmatprep.subr.mxu0 0.0
        %334 = vmatpush1.msra.mxu0 0.0
        %335 = vmatprep.subr.mxu0 0.0
        %336 = vmatpush1.msra.mxu0 0.0
        %337 = vmatprep.subr.mxu0 0.0
        %338 = vmatpush1.msra.mxu0 0.0
        %339 = vmatprep.subr.mxu0 0.0
        %340 = vmatpush1.msra.mxu0 0.0
        %341 = vmatprep.subr.mxu0 0.0
        %342 = vmatpush1.msra.mxu0 0.0
        %343 = vmatprep.subr.mxu0 0.0
        %344 = vmatpush1.msra.mxu0 0.0
        %345 = vmatprep.subr.mxu0 0.0
        %346 = vmatpush1.msra.mxu0 0.0
        %347 = vmatprep.subr.mxu0 0.0
        %348 = vmatpush1.msra.mxu0 0.0
        %349 = vmatprep.mubr.f32.mxu0 0.0
        %350 = vmatmul.mubr.f32.gmra.mrb[0].mxu0 %v283
        %v351 = vpop.f32.mrb[0].mxu0
        %v352 = vadd.f32 %v279, %v351
        %v353 = vpop.f32.mrb[0].mxu0
        %354 = vdwg.mxu0
        %v355 = vld [vmem:[#allocation7] sm:$0xff]
        %v356 = vld [vmem:[#allocation7 + $0x8] sm:$0xff]
        %v357 = vld [vmem:[#allocation7 + $0x10] sm:$0xff]
        %v358 = vld [vmem:[#allocation7 + $0x18] sm:$0xff]
        %v359 = vld [vmem:[#allocation7 + $0x20] sm:$0xff]
        %v360 = vld [vmem:[#allocation7 + $0x28] sm:$0xff]
        %v361 = vld [vmem:[#allocation7 + $0x30] sm:$0xff]
        %v362 = vld [vmem:[#allocation7 + $0x38] sm:$0xff]
        %v363 = vld [vmem:[#allocation7 + $0x40] sm:$0xff]
        %v364 = vld [vmem:[#allocation7 + $0x48] sm:$0xff]
        %v365 = vld [vmem:[#allocation7 + $0x50] sm:$0xff]
        %v366 = vld [vmem:[#allocation7 + $0x58] sm:$0xff]
        %v367 = vld [vmem:[#allocation7 + $0x60] sm:$0xff]
        %v368 = vld [vmem:[#allocation7 + $0x68] sm:$0xff]
        %v369 = vld [vmem:[#allocation7 + $0x70] sm:$0xff]
        %v370 = vld [vmem:[#allocation7 + $0x78] sm:$0xff]
        %v371 = vld [vmem:[%s4] sm:$0x1]
        %v373 = vlaneseq
        %v374 = vshrl.u32 %v373, 7
        %v375 = vsub.s32 0, %v374
        %v376 = vrot.slane %v371, %v375
        %378 = vmatprep.subr.mxu0 0.0
        %379 = vmatpush1.msra.mxu0 %v355
        %380 = vmatprep.subr.mxu0 0.0
        %381 = vmatpush1.msra.mxu0 %v356
        %382 = vmatprep.subr.mxu0 0.0
        %383 = vmatpush1.msra.mxu0 %v357
        %384 = vmatprep.subr.mxu0 0.0
        %385 = vmatpush1.msra.mxu0 %v358
        %386 = vmatprep.subr.mxu0 0.0
        %387 = vmatpush1.msra.mxu0 %v359
        %388 = vmatprep.subr.mxu0 0.0
        %389 = vmatpush1.msra.mxu0 %v360
        %390 = vmatprep.subr.mxu0 0.0
        %391 = vmatpush1.msra.mxu0 %v361
        %392 = vmatprep.subr.mxu0 0.0
        %393 = vmatpush1.msra.mxu0 %v362
        %394 = vmatprep.subr.mxu0 0.0
        %395 = vmatpush1.msra.mxu0 %v363
        %396 = vmatprep.subr.mxu0 0.0
        %397 = vmatpush1.msra.mxu0 %v364
        %398 = vmatprep.subr.mxu0 0.0
        %399 = vmatpush1.msra.mxu0 %v365
        %400 = vmatprep.subr.mxu0 0.0
        %401 = vmatpush1.msra.mxu0 %v366
        %402 = vmatprep.subr.mxu0 0.0
        %403 = vmatpush1.msra.mxu0 %v367
        %404 = vmatprep.subr.mxu0 0.0
        %405 = vmatpush1.msra.mxu0 %v368
        %406 = vmatprep.subr.mxu0 0.0
        %407 = vmatpush1.msra.mxu0 %v369
        %408 = vmatprep.subr.mxu0 0.0
        %409 = vmatpush1.msra.mxu0 %v370
        %410 = vmatprep.subr.mxu0 0.0
        %411 = vmatpush1.msra.mxu0 0.0
        %412 = vmatprep.subr.mxu0 0.0
        %413 = vmatpush1.msra.mxu0 0.0
        %414 = vmatprep.subr.mxu0 0.0
        %415 = vmatpush1.msra.mxu0 0.0
        %416 = vmatprep.subr.mxu0 0.0
        %417 = vmatpush1.msra.mxu0 0.0
        %418 = vmatprep.subr.mxu0 0.0
        %419 = vmatpush1.msra.mxu0 0.0
        %420 = vmatprep.subr.mxu0 0.0
        %421 = vmatpush1.msra.mxu0 0.0
        %422 = vmatprep.subr.mxu0 0.0
        %423 = vmatpush1.msra.mxu0 0.0
        %424 = vmatprep.subr.mxu0 0.0
        %425 = vmatpush1.msra.mxu0 0.0
        %426 = vmatprep.subr.mxu0 0.0
        %427 = vmatpush1.msra.mxu0 0.0
        %428 = vmatprep.subr.mxu0 0.0
        %429 = vmatpush1.msra.mxu0 0.0
        %430 = vmatprep.subr.mxu0 0.0
        %431 = vmatpush1.msra.mxu0 0.0
        %432 = vmatprep.subr.mxu0 0.0
        %433 = vmatpush1.msra.mxu0 0.0
        %434 = vmatprep.subr.mxu0 0.0
        %435 = vmatpush1.msra.mxu0 0.0
        %436 = vmatprep.subr.mxu0 0.0
        %437 = vmatpush1.msra.mxu0 0.0
        %438 = vmatprep.subr.mxu0 0.0
        %439 = vmatpush1.msra.mxu0 0.0
        %440 = vmatprep.subr.mxu0 0.0
        %441 = vmatpush1.msra.mxu0 0.0
        %442 = vmatprep.mubr.f32.mxu0 0.0
        %443 = vmatmul.mubr.f32.gmra.mrb[0].mxu0 %v352
        %v444 = vpop.f32.mrb[0].mxu0
        %v445 = vadd.f32 %v376, %v444
        %v446 = vpop.f32.mrb[0].mxu0
        %447 = vdwg.mxu0
        %448 = vst [vmem:[%s268] sm:$0xff] %v445
        %s449 = sand.u32 %s141, 1
        %s450 = scalar_lea.sflag [#allocation4], %s449
        %s451 = sand.u32 %s141, 1
        %s452 = smul.addr %s451, 8
        %s453 = scalar_lea.vmem [#allocation8], %s452
        // Predicated region
        $region53: #{tpu_custom_call.1} parent=39 // pred_check
          %p454 = pneg %p151
        $region54: #{tpu_custom_call.1} parent=39 // pred_check_branch
          %456 = sbr.rel (%p454) target = $region56
        $region55: #{tpu_custom_call.1} parent=39 // pred_region
          %s458 = ssub.s32 128, 128
          %459 = vsyncadd %s450, %s458
          %s460 = smul.addr %s23, 128
          %s461 = scalar_lea.hbm %s5, %s460
          %s463 = sshll.u32 %s453, 4
          %s464 = int_to_ptr.vmem [resolvable:$true] %s463
          %466 = dma.vmem_to_hbm [thread:$0]  %s464, 128, %s461, %s450
        $region56: #{tpu_custom_call.1} parent=39 // pred_fallthru
          _
      $region40: #{tpu_custom_call.1} parent=5 // pred_fallthru
        _
      %p467 = scmp.le.s32.totalorder 2, %s18
      // Predicated region
      $region57: #{tpu_custom_call.1} parent=5 // pred_check
        %p468 = pneg %p467
      $region58: #{tpu_custom_call.1} parent=5 // pred_check_branch
        %470 = sbr.rel (%p468) target = $region60
      $region59: #{tpu_custom_call.1} parent=5 // pred_region
        %s471 = ssub.s32 %s18, 2
        // Predicated region
        $region61: #{tpu_custom_call.1} parent=59 // pred_check
          %p472 = pneg %p157
        $region62: #{tpu_custom_call.1} parent=59 // pred_check_branch
          %474 = sbr.rel (%p472) target = $region64
        $region63: #{tpu_custom_call.1} parent=59 // pred_region
          %s475 = sand.u32 %s142, 1
          %s476 = scalar_lea.sflag [#allocation4], %s475
          %s477 = sand.u32 %s142, 1
          %s478 = smul.addr %s477, 8
          %s479 = scalar_lea.vmem [#allocation8], %s478
          %480 = dma.done %s476, 128
        $region64: #{tpu_custom_call.1} parent=59 // pred_fallthru
          _
      $region60: #{tpu_custom_call.1} parent=5 // pred_fallthru
        _
    $region6: #{tpu_custom_call.1} parent=1 // loop_footer
      %s22 = sadd.s32 1, %s18
    $region7: #{tpu_custom_call.1} parent=1 // loop_footer_branch
      %17 = sbr.rel target = $region3
    $region8: #{tpu_custom_call.1} parent=1 // loop_exit
      _
    %481 = vsyncpa [#allocation3], 1
    %s482 = scalar_lea.sflag [#allocation3], 1
    %483 = vsyncpa %s482, 1
    %484 = vsyncpa [#allocation6], 1
    %485 = vsyncpa [#allocation4], 1
    %s486 = scalar_lea.sflag [#allocation4], 1
    %487 = vsyncpa %s486, 1

</llo_original>
